<compile_context>
chip_gen: v7x
topology: tpu7x:2x2x1
jax: 0.10.0
libtpu: 0.0.40
codegen_flags: <defaults>
</compile_context>

<pallas_src>
import math

import jax
import jax.numpy as jnp
from jax.experimental import pallas as pl
from jax.experimental.pallas import tpu as pltpu

# ---------------- configuration (small, consistent with the module) ----------------
KERNEL_SIZE = 8          # inception kernel_size  -> kernel_size_s = [8, 4, 2]
NB_CHANNELS = 4          # input channels (depth == 0)
NB_FILTERS  = 8          # per-branch filters
BOTTLENECK  = 4          # bottleneck_size
NB_FEATURES = 4 * NB_FILTERS   # = 32, must equal concat width for BatchNorm1d
N = 2                    # batch
T = 16                   # sequence length
EPS = 1e-5               # BatchNorm1d default eps

K1 = KERNEL_SIZE         # conv1 kernel (= kernel_size_s[0])
K2 = KERNEL_SIZE // 2    # conv2 kernel (= kernel_size_s[1])
# TODO(synk): conv3/pad3 (kernel_size_s[2] == 2) exist in __init__ but the reference
#             forward() never calls them, so they are not translated.


def _pad_conv_lr(k):
    return max(math.ceil(k / 2) - 1, 0), max(math.floor(k / 2), 0)


L_IN, R_IN = _pad_conv_lr(KERNEL_SIZE)   # (3, 4)
L1, R1 = _pad_conv_lr(K1)                # (3, 4)
L2, R2 = _pad_conv_lr(K2)                # (1, 2)
OFF2 = L1 - L2                           # conv2 tap offset inside the K1-tap frame


# ------------------------------- Pallas kernel -------------------------------------
def _im2col_same(a, width, k, left, right):
    """Per-sample zero-padded ('same') im2col, built entirely in registers.

    a: (N*T, width)  ->  (N*T, k*width), where
    out[n*T + t, j*width + c] = pad(a_sample_n)[t + j, c].
    """
    zl = jnp.zeros((left, width), jnp.float32)
    zr = jnp.zeros((right, width), jnp.float32)
    rows = []
    for n in range(N):                                      # tiny static loop (N == 2)
        a_n = a[n * T:(n + 1) * T, :]                       # (T, width)
        a_pad = jnp.concatenate([zl, a_n, zr], axis=0)      # (T + k - 1, width)
        rows.append(jnp.concatenate([a_pad[j:j + T, :] for j in range(k)], axis=1))
    return jnp.concatenate(rows, axis=0)                    # (N*T, k*width)


def inception_kernel(x_ref,      # (N*T, C_in)      time-major raw input
                     w_in_ref,   # (K*C_in, BOTTLENECK)
                     w12_ref,    # (K1*BOTTLENECK, 2*NB_FILTERS)  conv1 | conv2 fused
                     w4_ref,     # (C_in, NB_FILTERS)             1x1 conv
                     gamma_ref,  # (1, NB_FEATURES)
                     beta_ref,   # (1, NB_FEATURES)
                     out_ref):   # (N*T, NB_FEATURES)
    f32 = jnp.float32
    F = NB_FILTERS
    C = NB_CHANNELS

    x = x_ref[...]                                               # (N*T, C)

    # ---- in-register im2col of the 'same'-padded input ----
    xc = _im2col_same(x, C, KERNEL_SIZE, L_IN, R_IN)             # (N*T, K*C)

    # ---- bottleneck conv_in: one matmul for the whole batch ----
    b = jnp.dot(xc, w_in_ref[...], preferred_element_type=f32)   # (N*T, B)

    # ---- conv1 and conv2 fused into a single matmul over the bottleneck im2col ----
    bc = _im2col_same(b, BOTTLENECK, K1, L1, R1)                 # (N*T, K1*B)
    y12 = jnp.dot(bc, w12_ref[...], preferred_element_type=f32)  # (N*T, 2F)

    # ---- right branch: maxpool(k=3, s=1, zero pad 1/1) read straight from the
    #      conv im2col taps (conv padding already contains the pool padding),
    #      then 1x1 conv4 ----
    m = jnp.maximum(jnp.maximum(xc[:, 2 * C:3 * C], xc[:, 3 * C:4 * C]),
                    xc[:, 4 * C:5 * C])                          # (N*T, C)
    y4 = jnp.dot(m, w4_ref[...], preferred_element_type=f32)     # (N*T, F)

    # ---- concat (y1, y2, y3=y1, y4); branch 3 re-uses conv1 per the reference ----
    y = jnp.concatenate([y12, y12[:, :F], y4], axis=1)           # (N*T, 4F)

    # ---- BatchNorm1d (training mode, biased batch stats over N*T) folded + ReLU ----
    mean = jnp.mean(y, axis=0, keepdims=True)
    var = jnp.mean((y - mean) ** 2, axis=0, keepdims=True)       # biased variance
    scale = gamma_ref[...] * jax.lax.rsqrt(var + EPS)
    shift = beta_ref[...] - mean * scale
    out_ref[...] = jnp.maximum(y * scale + shift, 0.0)           # single slab store


# --------------------------------- host wrapper -------------------------------------
@jax.jit
def inception_forward(x, w_in, w1, w2, w4, gamma, beta):
    """x: (N, C_in, T); conv weights in PyTorch Conv1d layout (C_out, C_in, K)."""
    f32 = jnp.float32

    # (N, C, T) -> time-major rows (N*T, C); all im2col happens inside the kernel.
    x_nt = jnp.transpose(x, (0, 2, 1)).reshape(N * T, NB_CHANNELS).astype(f32)

    # conv weights -> matmul form (tiny, done once per call).
    w_in_col = jnp.transpose(w_in, (2, 1, 0)).reshape(
        KERNEL_SIZE * NB_CHANNELS, BOTTLENECK).astype(f32)
    w1_col = jnp.transpose(w1, (2, 1, 0)).reshape(K1 * BOTTLENECK, NB_FILTERS).astype(f32)
    w2_k = jnp.transpose(w2, (2, 1, 0)).astype(f32)              # (K2, B, F)
    w2_full = jnp.zeros((K1, BOTTLENECK, NB_FILTERS), f32).at[OFF2:OFF2 + K2].set(w2_k)
    w2_col = w2_full.reshape(K1 * BOTTLENECK, NB_FILTERS)
    w12 = jnp.concatenate([w1_col, w2_col], axis=1)              # (K1*B, 2F)
    w4_col = jnp.transpose(w4[:, :, 0], (1, 0)).astype(f32)      # (C_in, F)
    gamma2 = gamma.reshape(1, -1).astype(f32)
    beta2 = beta.reshape(1, -1).astype(f32)

    # Gridless call: total footprint is a few KB, far below VMEM on v5e/v6e/v7x.
    # TODO(synk): at realistic N/T tile over time with a grid (BN stats would then
    #             need a two-pass or cross-tile reduction); at N=2, T=16 the grid
    #             per-step overhead (~0.35us) would dominate.
    out_flat = pl.pallas_call(
        inception_kernel,
        out_shape=jax.ShapeDtypeStruct((N * T, NB_FEATURES), jnp.float32),
        in_specs=[pl.BlockSpec(memory_space=pltpu.MemorySpace.VMEM)] * 6,
        out_specs=pl.BlockSpec(memory_space=pltpu.MemorySpace.VMEM),
    )(x_nt, w_in_col, w12, w4_col, gamma2, beta2)

    return jnp.transpose(out_flat.reshape(N, T, NB_FEATURES), (0, 2, 1))  # (N, C, T)


# ------------------------------ pure-JAX reference ----------------------------------
def _conv1d_same(x, w, left, right):
    # x: (N, C_in, T), w: (C_out, C_in, K) -> (N, C_out, T)
    xp = jnp.pad(x, ((0, 0), (0, 0), (left, right)))
    return jax.lax.conv_general_dilated(
        xp, w, window_strides=(1,), padding="VALID",
        dimension_numbers=("NCH", "OIH", "NCH"))


def reference_forward(x, w_in, w1, w2, w4, gamma, beta):
    xl = _conv1d_same(x, w_in, L_IN, R_IN)
    y1 = _conv1d_same(xl, w1, L1, R1)
    y2 = _conv1d_same(xl, w2, L2, R2)
    y3 = _conv1d_same(xl, w1, L1, R1)          # forward re-uses conv1 (reference "bug")
    xp = jnp.pad(x, ((0, 0), (0, 0), (1, 1)))
    m = jax.lax.reduce_window(xp, jnp.array(-jnp.inf, xp.dtype), jax.lax.max,
                              (1, 1, 3), (1, 1, 1), "VALID")
    y4 = _conv1d_same(m, w4, 0, 0)
    y = jnp.concatenate([y1, y2, y3, y4], axis=1)
    mean = y.mean(axis=(0, 2), keepdims=True)
    var = ((y - mean) ** 2).mean(axis=(0, 2), keepdims=True)
    y_bn = (y - mean) / jnp.sqrt(var + EPS) * gamma[None, :, None] + beta[None, :, None]
    return jnp.maximum(y_bn, 0.0)


# ------------------------------------- main ------------------------------------------
if __name__ == "__main__":
    key = jax.random.PRNGKey(0)
    kx, k0, k1, k2, k4, kg, kb = jax.random.split(key, 7)

    x = jax.random.normal(kx, (N, NB_CHANNELS, T), dtype=jnp.float32)

    # Conv1d weights in PyTorch layout (C_out, C_in, K), deterministic init.
    w_in = 0.1 * jax.random.normal(k0, (BOTTLENECK, NB_CHANNELS, KERNEL_SIZE), jnp.float32)
    w1 = 0.1 * jax.random.normal(k1, (NB_FILTERS, BOTTLENECK, K1), jnp.float32)
    w2 = 0.1 * jax.random.normal(k2, (NB_FILTERS, BOTTLENECK, K2), jnp.float32)
    w4 = 0.1 * jax.random.normal(k4, (NB_FILTERS, NB_CHANNELS, 1), jnp.float32)
    gamma = 1.0 + 0.1 * jax.random.normal(kg, (NB_FEATURES,), jnp.float32)
    beta = 0.1 * jax.random.normal(kb, (NB_FEATURES,), jnp.float32)

    out = inception_forward(x, w_in, w1, w2, w4, gamma, beta)
    out = jax.block_until_ready(out)

    ref = reference_forward(x, w_in, w1, w2, w4, gamma, beta)
    assert out.shape == (N, NB_FEATURES, T)
    assert jnp.allclose(out, ref, atol=1e-4, rtol=1e-4), (
        f"max abs err = {jnp.max(jnp.abs(out - ref))}")

    print("KERNEL_OK")
</pallas_src>

<mosaic_0001>
module attributes {stable_mosaic.version = 11 : i64} {
  func.func @inception_kernel(%arg0: memref<32x4xf32, #tpu.memory_space<vmem>>, %arg1: memref<32x4xf32, #tpu.memory_space<vmem>>, %arg2: memref<32x16xf32, #tpu.memory_space<vmem>>, %arg3: memref<4x8xf32, #tpu.memory_space<vmem>>, %arg4: memref<1x32xf32, #tpu.memory_space<vmem>>, %arg5: memref<1x32xf32, #tpu.memory_space<vmem>>, %arg6: memref<32x32xf32, #tpu.memory_space<vmem>>) attributes {dimension_semantics = [], scalar_prefetch = 0 : i64, scratch_operands = 0 : i64, tpu.core_type = #tpu.core_type<tc>} {
    %c0 = arith.constant 0 : index
    %c0_0 = arith.constant 0 : index
    %0 = vector.load %arg0[%c0, %c0_0] : memref<32x4xf32, #tpu.memory_space<vmem>>, vector<32x4xf32>
    %cst = arith.constant 0.000000e+00 : f32
    %1 = vector.broadcast %cst : f32 to vector<3x4xf32>
    %cst_1 = arith.constant 0.000000e+00 : f32
    %2 = vector.broadcast %cst_1 : f32 to vector<4x4xf32>
    %3 = vector.extract_strided_slice %0 {offsets = [0, 0], sizes = [16, 4], strides = [1, 1]} : vector<32x4xf32> to vector<16x4xf32>
    %4 = tpu.concatenate %1, %3, %2 in 0 : vector<3x4xf32>, vector<16x4xf32>, vector<4x4xf32> -> vector<23x4xf32>
    %5 = vector.extract_strided_slice %4 {offsets = [0, 0], sizes = [16, 4], strides = [1, 1]} : vector<23x4xf32> to vector<16x4xf32>
    %6 = vector.extract_strided_slice %4 {offsets = [1, 0], sizes = [16, 4], strides = [1, 1]} : vector<23x4xf32> to vector<16x4xf32>
    %7 = vector.extract_strided_slice %4 {offsets = [2, 0], sizes = [16, 4], strides = [1, 1]} : vector<23x4xf32> to vector<16x4xf32>
    %8 = vector.extract_strided_slice %4 {offsets = [3, 0], sizes = [16, 4], strides = [1, 1]} : vector<23x4xf32> to vector<16x4xf32>
    %9 = vector.extract_strided_slice %4 {offsets = [4, 0], sizes = [16, 4], strides = [1, 1]} : vector<23x4xf32> to vector<16x4xf32>
    %10 = vector.extract_strided_slice %4 {offsets = [5, 0], sizes = [16, 4], strides = [1, 1]} : vector<23x4xf32> to vector<16x4xf32>
    %11 = vector.extract_strided_slice %4 {offsets = [6, 0], sizes = [16, 4], strides = [1, 1]} : vector<23x4xf32> to vector<16x4xf32>
    %12 = vector.extract_strided_slice %4 {offsets = [7, 0], sizes = [16, 4], strides = [1, 1]} : vector<23x4xf32> to vector<16x4xf32>
    %13 = tpu.concatenate %5, %6, %7, %8, %9, %10, %11, %12 in 1 : vector<16x4xf32>, vector<16x4xf32>, vector<16x4xf32>, vector<16x4xf32>, vector<16x4xf32>, vector<16x4xf32>, vector<16x4xf32>, vector<16x4xf32> -> vector<16x32xf32>
    %14 = vector.extract_strided_slice %0 {offsets = [16, 0], sizes = [16, 4], strides = [1, 1]} : vector<32x4xf32> to vector<16x4xf32>
    %15 = tpu.concatenate %1, %14, %2 in 0 : vector<3x4xf32>, vector<16x4xf32>, vector<4x4xf32> -> vector<23x4xf32>
    %16 = vector.extract_strided_slice %15 {offsets = [0, 0], sizes = [16, 4], strides = [1, 1]} : vector<23x4xf32> to vector<16x4xf32>
    %17 = vector.extract_strided_slice %15 {offsets = [1, 0], sizes = [16, 4], strides = [1, 1]} : vector<23x4xf32> to vector<16x4xf32>
    %18 = vector.extract_strided_slice %15 {offsets = [2, 0], sizes = [16, 4], strides = [1, 1]} : vector<23x4xf32> to vector<16x4xf32>
    %19 = vector.extract_strided_slice %15 {offsets = [3, 0], sizes = [16, 4], strides = [1, 1]} : vector<23x4xf32> to vector<16x4xf32>
    %20 = vector.extract_strided_slice %15 {offsets = [4, 0], sizes = [16, 4], strides = [1, 1]} : vector<23x4xf32> to vector<16x4xf32>
    %21 = vector.extract_strided_slice %15 {offsets = [5, 0], sizes = [16, 4], strides = [1, 1]} : vector<23x4xf32> to vector<16x4xf32>
    %22 = vector.extract_strided_slice %15 {offsets = [6, 0], sizes = [16, 4], strides = [1, 1]} : vector<23x4xf32> to vector<16x4xf32>
    %23 = vector.extract_strided_slice %15 {offsets = [7, 0], sizes = [16, 4], strides = [1, 1]} : vector<23x4xf32> to vector<16x4xf32>
    %24 = tpu.concatenate %16, %17, %18, %19, %20, %21, %22, %23 in 1 : vector<16x4xf32>, vector<16x4xf32>, vector<16x4xf32>, vector<16x4xf32>, vector<16x4xf32>, vector<16x4xf32>, vector<16x4xf32>, vector<16x4xf32> -> vector<16x32xf32>
    %25 = tpu.concatenate %13, %24 in 0 : vector<16x32xf32>, vector<16x32xf32> -> vector<32x32xf32>
    %c0_2 = arith.constant 0 : index
    %c0_3 = arith.constant 0 : index
    %26 = vector.load %arg1[%c0_2, %c0_3] : memref<32x4xf32, #tpu.memory_space<vmem>>, vector<32x4xf32>
    %cst_4 = arith.constant dense<0.000000e+00> : vector<32x4xf32>
    %27 = tpu.matmul %25, %26, %cst_4 {dimension_numbers = #tpu.dot_dimension_numbers<[1], [0], [0], [1], [0, 0, 1, 1], [], []>} : vector<32x32xf32>, vector<32x4xf32>, vector<32x4xf32> -> vector<32x4xf32>
    %cst_5 = arith.constant 0.000000e+00 : f32
    %28 = vector.broadcast %cst_5 : f32 to vector<3x4xf32>
    %cst_6 = arith.constant 0.000000e+00 : f32
    %29 = vector.broadcast %cst_6 : f32 to vector<4x4xf32>
    %30 = vector.extract_strided_slice %27 {offsets = [0, 0], sizes = [16, 4], strides = [1, 1]} : vector<32x4xf32> to vector<16x4xf32>
    %31 = tpu.concatenate %28, %30, %29 in 0 : vector<3x4xf32>, vector<16x4xf32>, vector<4x4xf32> -> vector<23x4xf32>
    %32 = vector.extract_strided_slice %31 {offsets = [0, 0], sizes = [16, 4], strides = [1, 1]} : vector<23x4xf32> to vector<16x4xf32>
    %33 = vector.extract_strided_slice %31 {offsets = [1, 0], sizes = [16, 4], strides = [1, 1]} : vector<23x4xf32> to vector<16x4xf32>
    %34 = vector.extract_strided_slice %31 {offsets = [2, 0], sizes = [16, 4], strides = [1, 1]} : vector<23x4xf32> to vector<16x4xf32>
    %35 = vector.extract_strided_slice %31 {offsets = [3, 0], sizes = [16, 4], strides = [1, 1]} : vector<23x4xf32> to vector<16x4xf32>
    %36 = vector.extract_strided_slice %31 {offsets = [4, 0], sizes = [16, 4], strides = [1, 1]} : vector<23x4xf32> to vector<16x4xf32>
    %37 = vector.extract_strided_slice %31 {offsets = [5, 0], sizes = [16, 4], strides = [1, 1]} : vector<23x4xf32> to vector<16x4xf32>
    %38 = vector.extract_strided_slice %31 {offsets = [6, 0], sizes = [16, 4], strides = [1, 1]} : vector<23x4xf32> to vector<16x4xf32>
    %39 = vector.extract_strided_slice %31 {offsets = [7, 0], sizes = [16, 4], strides = [1, 1]} : vector<23x4xf32> to vector<16x4xf32>
    %40 = tpu.concatenate %32, %33, %34, %35, %36, %37, %38, %39 in 1 : vector<16x4xf32>, vector<16x4xf32>, vector<16x4xf32>, vector<16x4xf32>, vector<16x4xf32>, vector<16x4xf32>, vector<16x4xf32>, vector<16x4xf32> -> vector<16x32xf32>
    %41 = vector.extract_strided_slice %27 {offsets = [16, 0], sizes = [16, 4], strides = [1, 1]} : vector<32x4xf32> to vector<16x4xf32>
    %42 = tpu.concatenate %28, %41, %29 in 0 : vector<3x4xf32>, vector<16x4xf32>, vector<4x4xf32> -> vector<23x4xf32>
    %43 = vector.extract_strided_slice %42 {offsets = [0, 0], sizes = [16, 4], strides = [1, 1]} : vector<23x4xf32> to vector<16x4xf32>
    %44 = vector.extract_strided_slice %42 {offsets = [1, 0], sizes = [16, 4], strides = [1, 1]} : vector<23x4xf32> to vector<16x4xf32>
    %45 = vector.extract_strided_slice %42 {offsets = [2, 0], sizes = [16, 4], strides = [1, 1]} : vector<23x4xf32> to vector<16x4xf32>
    %46 = vector.extract_strided_slice %42 {offsets = [3, 0], sizes = [16, 4], strides = [1, 1]} : vector<23x4xf32> to vector<16x4xf32>
    %47 = vector.extract_strided_slice %42 {offsets = [4, 0], sizes = [16, 4], strides = [1, 1]} : vector<23x4xf32> to vector<16x4xf32>
    %48 = vector.extract_strided_slice %42 {offsets = [5, 0], sizes = [16, 4], strides = [1, 1]} : vector<23x4xf32> to vector<16x4xf32>
    %49 = vector.extract_strided_slice %42 {offsets = [6, 0], sizes = [16, 4], strides = [1, 1]} : vector<23x4xf32> to vector<16x4xf32>
    %50 = vector.extract_strided_slice %42 {offsets = [7, 0], sizes = [16, 4], strides = [1, 1]} : vector<23x4xf32> to vector<16x4xf32>
    %51 = tpu.concatenate %43, %44, %45, %46, %47, %48, %49, %50 in 1 : vector<16x4xf32>, vector<16x4xf32>, vector<16x4xf32>, vector<16x4xf32>, vector<16x4xf32>, vector<16x4xf32>, vector<16x4xf32>, vector<16x4xf32> -> vector<16x32xf32>
    %52 = tpu.concatenate %40, %51 in 0 : vector<16x32xf32>, vector<16x32xf32> -> vector<32x32xf32>
    %c0_7 = arith.constant 0 : index
    %c0_8 = arith.constant 0 : index
    %53 = vector.load %arg2[%c0_7, %c0_8] : memref<32x16xf32, #tpu.memory_space<vmem>>, vector<32x16xf32>
    %cst_9 = arith.constant dense<0.000000e+00> : vector<32x16xf32>
    %54 = tpu.matmul %52, %53, %cst_9 {dimension_numbers = #tpu.dot_dimension_numbers<[1], [0], [0], [1], [0, 0, 1, 1], [], []>} : vector<32x32xf32>, vector<32x16xf32>, vector<32x16xf32> -> vector<32x16xf32>
    %55 = vector.extract_strided_slice %25 {offsets = [0, 8], sizes = [32, 4], strides = [1, 1]} : vector<32x32xf32> to vector<32x4xf32>
    %56 = vector.extract_strided_slice %25 {offsets = [0, 12], sizes = [32, 4], strides = [1, 1]} : vector<32x32xf32> to vector<32x4xf32>
    %57 = arith.maximumf %55, %56 : vector<32x4xf32>
    %58 = vector.extract_strided_slice %25 {offsets = [0, 16], sizes = [32, 4], strides = [1, 1]} : vector<32x32xf32> to vector<32x4xf32>
    %59 = arith.maximumf %57, %58 : vector<32x4xf32>
    %c0_10 = arith.constant 0 : index
    %c0_11 = arith.constant 0 : index
    %60 = vector.load %arg3[%c0_10, %c0_11] : memref<4x8xf32, #tpu.memory_space<vmem>>, vector<4x8xf32>
    %cst_12 = arith.constant dense<0.000000e+00> : vector<32x8xf32>
    %61 = tpu.matmul %59, %60, %cst_12 {dimension_numbers = #tpu.dot_dimension_numbers<[1], [0], [0], [1], [0, 0, 1, 1], [], []>} : vector<32x4xf32>, vector<4x8xf32>, vector<32x8xf32> -> vector<32x8xf32>
    %62 = vector.extract_strided_slice %54 {offsets = [0, 0], sizes = [32, 8], strides = [1, 1]} : vector<32x16xf32> to vector<32x8xf32>
    %63 = tpu.concatenate %54, %62, %61 in 1 : vector<32x16xf32>, vector<32x8xf32>, vector<32x8xf32> -> vector<32x32xf32>
    %cst_13 = arith.constant dense<0.000000e+00> : vector<32xf32>
    %64 = vector.multi_reduction <add>, %63, %cst_13 [0] : vector<32x32xf32> to vector<32xf32>
    %65 = vector.shape_cast %64 : vector<32xf32> to vector<1x32xf32>
    %cst_14 = arith.constant 3.200000e+01 : f32
    %66 = vector.broadcast %cst_14 : f32 to vector<1x32xf32>
    %67 = arith.divf %65, %66 : vector<1x32xf32>
    %68 = vector.broadcast %67 : vector<1x32xf32> to vector<32x32xf32>
    %69 = arith.subf %63, %68 : vector<32x32xf32>
    %70 = arith.mulf %69, %69 : vector<32x32xf32>
    %cst_15 = arith.constant dense<0.000000e+00> : vector<32xf32>
    %71 = vector.multi_reduction <add>, %70, %cst_15 [0] : vector<32x32xf32> to vector<32xf32>
    %72 = vector.shape_cast %71 : vector<32xf32> to vector<1x32xf32>
    %cst_16 = arith.constant 3.200000e+01 : f32
    %73 = vector.broadcast %cst_16 : f32 to vector<1x32xf32>
    %74 = arith.divf %72, %73 : vector<1x32xf32>
    %c0_17 = arith.constant 0 : index
    %c0_18 = arith.constant 0 : index
    %75 = vector.load %arg4[%c0_17, %c0_18] : memref<1x32xf32, #tpu.memory_space<vmem>>, vector<1x32xf32>
    %cst_19 = arith.constant 9.99999974E-6 : f32
    %76 = vector.broadcast %cst_19 : f32 to vector<1x32xf32>
    %77 = arith.addf %74, %76 : vector<1x32xf32>
    %78 = math.rsqrt %77 : vector<1x32xf32>
    %79 = arith.mulf %75, %78 : vector<1x32xf32>
    %c0_20 = arith.constant 0 : index
    %c0_21 = arith.constant 0 : index
    %80 = vector.load %arg5[%c0_20, %c0_21] : memref<1x32xf32, #tpu.memory_space<vmem>>, vector<1x32xf32>
    %81 = arith.mulf %67, %79 : vector<1x32xf32>
    %82 = arith.subf %80, %81 : vector<1x32xf32>
    %83 = vector.broadcast %79 : vector<1x32xf32> to vector<32x32xf32>
    %84 = arith.mulf %63, %83 : vector<32x32xf32>
    %85 = vector.broadcast %82 : vector<1x32xf32> to vector<32x32xf32>
    %86 = arith.addf %84, %85 : vector<32x32xf32>
    %cst_22 = arith.constant 0.000000e+00 : f32
    %87 = vector.broadcast %cst_22 : f32 to vector<32x32xf32>
    %88 = arith.maximumf %86, %87 : vector<32x32xf32>
    %c0_23 = arith.constant 0 : index
    %c0_24 = arith.constant 0 : index
    %89 = vector.load %arg6[%c0_23, %c0_24] : memref<32x32xf32, #tpu.memory_space<vmem>>, vector<32x32xf32>
    tpu.vector_store %arg6[%c0_23, %c0_24], %88 {strides = array<i32>} : memref<32x32xf32, #tpu.memory_space<vmem>>, vector<32x32xf32>,
    return
  }
}

</mosaic_0001>

<llo_original>
// kernel: inception_forward.1
$region0: #{inception_forward.1}
  #allocation0 [shape = 'u32[]', space=smem, size = 0x4, offset = 0x4, fixed_abs, tag = 'smem constant byte address 0x4 - core index']
  #allocation1 [shape = 'u32[144,128]{1,0:T(1,128)}', space=vmem, size = 0x12000, scoped, tag = 'internal scratch']
  %s0 = inlined_call_operand.vmem [shape: f32[32,4], index: 0, kind: input, shape index: {}]
  %s1 = inlined_call_operand.vmem [shape: f32[32,4], index: 1, kind: input, shape index: {}]
  %s2 = inlined_call_operand.vmem [shape: f32[32,16], index: 2, kind: input, shape index: {}]
  %s3 = inlined_call_operand.vmem [shape: f32[4,8], index: 3, kind: input, shape index: {}]
  %s4 = inlined_call_operand.vmem [shape: f32[1,32], index: 4, kind: input, shape index: {}]
  %s5 = inlined_call_operand.vmem [shape: f32[1,32], index: 5, kind: input, shape index: {}]
  %s6 = inlined_call_operand.hbm [shape: f32[32,32], index: 6, kind: output, shape index: {}]
  %s7 = sld [smem:[#allocation0]]
  $region34: #{inception_forward.1} parent=0
    _
  %s9 = ssub.s32 1, %s7
  %s10 = scalar_select 0, %s9, %s7
  $region1: #{inception_forward.1} parent=0
    #allocation2 [shape = 'u8[16384]{0}', space=vmem, size = 0x4000, scoped, tag = 'output window, operand 0, single buffered']
    #allocation3 [shape = 's32[1]{0}', space=sflag, size = 0x4, scoped, tag = 'scoped memory for inception_forward.1']
    %11 = vsyncpa [#allocation3], 0
    // Predicated region
    $region2: #{inception_forward.1} parent=1 // pred_check
      _
    $region3: #{inception_forward.1} parent=1 // pred_check_branch
      %13 = sbr.rel (0) target = $region5
    $region4: #{inception_forward.1} parent=1 // pred_region
      _
    $region5: #{inception_forward.1} parent=1 // pred_fallthru
      _
    // Predicated region
    $region6: #{inception_forward.1} parent=1 // pred_check
      _
    $region7: #{inception_forward.1} parent=1 // pred_check_branch
      %15 = sbr.rel (0) target = $region9
    $region8: #{inception_forward.1} parent=1 // pred_region
      _
    $region9: #{inception_forward.1} parent=1 // pred_fallthru
      _
    // Predicated region
    $region10: #{inception_forward.1} parent=1 // pred_check
      _
    $region11: #{inception_forward.1} parent=1 // pred_check_branch
      %17 = sbr.rel (0) target = $region13
    $region12: #{inception_forward.1} parent=1 // pred_region
      _
    $region13: #{inception_forward.1} parent=1 // pred_fallthru
      _
    // Predicated region
    $region14: #{inception_forward.1} parent=1 // pred_check
      _
    $region15: #{inception_forward.1} parent=1 // pred_check_branch
      %19 = sbr.rel (0) target = $region17
    $region16: #{inception_forward.1} parent=1 // pred_region
      _
    $region17: #{inception_forward.1} parent=1 // pred_fallthru
      _
    // Predicated region
    $region18: #{inception_forward.1} parent=1 // pred_check
      _
    $region19: #{inception_forward.1} parent=1 // pred_check_branch
      %21 = sbr.rel (0) target = $region21
    $region20: #{inception_forward.1} parent=1 // pred_region
      _
    $region21: #{inception_forward.1} parent=1 // pred_fallthru
      _
    // Predicated region
    $region22: #{inception_forward.1} parent=1 // pred_check
      _
    $region23: #{inception_forward.1} parent=1 // pred_check_branch
      %23 = sbr.rel (0) target = $region25
    $region24: #{inception_forward.1} parent=1 // pred_region
      _
    $region25: #{inception_forward.1} parent=1 // pred_fallthru
      _
    %v24 = vld [vmem:[%s0] sm:$0xff]
    %v25 = vld [vmem:[%s0 + $0x8] sm:$0xff]
    %v26 = vld [vmem:[%s0 + $0x10] sm:$0xff]
    %v27 = vld [vmem:[%s0 + $0x18] sm:$0xff]
    %vm30 = vcmask 1042432
    %v31 = vrot.slane %v24, 5
    %v32 = vrot.slane %v25, 5
    %v33 = vsel %vm30, %v31, %v32
    %v37 = vsel %vm30, 0.0, %v31
    %v38 = vsel %vm30, %v32, 0.0
    %vm41 = vcmask 1046528
    %v42 = vrot.slane %v37, 1
    %v43 = vrot.slane %v33, 1
    %v44 = vsel %vm41, %v42, %v43
    %v45 = vrot.slane %v38, 1
    %v46 = vsel %vm41, %v43, %v45
    %47 = vrot.lane.b32.xlu0 %v44, 4
    %v48 = vpop.permute.xlu0 %47
    %49 = vrot.lane.b32.xlu0 %v46, 4
    %v50 = vpop.permute.xlu0 %49
    %vm53 = vcmask 1045504
    %v54 = vrot.slane %v37, 2
    %v55 = vrot.slane %v33, 2
    %v56 = vsel %vm53, %v54, %v55
    %v57 = vrot.slane %v38, 2
    %v58 = vsel %vm53, %v55, %v57
    %59 = vrot.lane.b32.xlu0 %v56, 8
    %v60 = vpop.permute.xlu0 %59
    %61 = vrot.lane.b32.xlu0 %v58, 8
    %v62 = vpop.permute.xlu0 %61
    %vm65 = vcmask 1044480
    %v66 = vrot.slane %v37, 3
    %v67 = vrot.slane %v33, 3
    %v68 = vsel %vm65, %v66, %v67
    %v69 = vrot.slane %v38, 3
    %v70 = vsel %vm65, %v67, %v69
    %71 = vrot.lane.b32.xlu0 %v68, 12
    %v72 = vpop.permute.xlu0 %71
    %73 = vrot.lane.b32.xlu0 %v70, 12
    %v74 = vpop.permute.xlu0 %73
    %vm77 = vcmask 1043456
    %v78 = vrot.slane %v37, 4
    %v79 = vrot.slane %v33, 4
    %v80 = vsel %vm77, %v78, %v79
    %v81 = vrot.slane %v38, 4
    %v82 = vsel %vm77, %v79, %v81
    %83 = vrot.lane.b32.xlu0 %v80, 16
    %v84 = vpop.permute.xlu0 %83
    %85 = vrot.lane.b32.xlu0 %v82, 16
    %v86 = vpop.permute.xlu0 %85
    %v89 = vrot.slane %v37, 5
    %v90 = vrot.slane %v33, 5
    %v91 = vsel %vm30, %v89, %v90
    %v92 = vrot.slane %v38, 5
    %v93 = vsel %vm30, %v90, %v92
    %94 = vrot.lane.b32.xlu0 %v91, 20
    %v95 = vpop.permute.xlu0 %94
    %96 = vrot.lane.b32.xlu0 %v93, 20
    %v97 = vpop.permute.xlu0 %96
    %vm100 = vcmask 1041408
    %v101 = vrot.slane %v37, 6
    %v102 = vrot.slane %v33, 6
    %v103 = vsel %vm100, %v101, %v102
    %v104 = vrot.slane %v38, 6
    %v105 = vsel %vm100, %v102, %v104
    %106 = vrot.lane.b32.xlu0 %v103, 24
    %v107 = vpop.permute.xlu0 %106
    %108 = vrot.lane.b32.xlu0 %v105, 24
    %v109 = vpop.permute.xlu0 %108
    %vm112 = vcmask 1040384
    %v113 = vrot.slane %v37, 7
    %v114 = vrot.slane %v33, 7
    %v115 = vsel %vm112, %v113, %v114
    %v116 = vrot.slane %v38, 7
    %v117 = vsel %vm112, %v114, %v116
    %118 = vrot.lane.b32.xlu0 %v115, 28
    %v119 = vpop.permute.xlu0 %118
    %120 = vrot.lane.b32.xlu0 %v117, 28
    %v121 = vpop.permute.xlu0 %120
    %vm124 = vcmask 31744
    %v125 = vsel %vm124, %v37, %v48
    %v126 = vsel %vm124, %v33, %v50
    %vm127 = vcmask 64512
    %v128 = vsel %vm127, %v125, %v60
    %v129 = vsel %vm127, %v126, %v62
    %vm130 = vcmask 97280
    %v131 = vsel %vm130, %v128, %v72
    %v132 = vsel %vm130, %v129, %v74
    %vm133 = vcmask 130048
    %v134 = vsel %vm133, %v131, %v84
    %v135 = vsel %vm133, %v132, %v86
    %vm136 = vcmask 162816
    %v137 = vsel %vm136, %v134, %v95
    %v138 = vsel %vm136, %v135, %v97
    %vm139 = vcmask 195584
    %v140 = vsel %vm139, %v137, %v107
    %v141 = vsel %vm139, %v138, %v109
    %vm142 = vcmask 228352
    %v143 = vsel %vm142, %v140, %v119
    %v144 = vsel %vm142, %v141, %v121
    %v147 = vrot.slane %v26, 5
    %v148 = vrot.slane %v27, 5
    %v149 = vsel %vm30, %v147, %v148
    %v153 = vsel %vm30, 0.0, %v147
    %v154 = vsel %vm30, %v148, 0.0
    %v157 = vrot.slane %v153, 1
    %v158 = vrot.slane %v149, 1
    %v159 = vsel %vm41, %v157, %v158
    %v160 = vrot.slane %v154, 1
    %v161 = vsel %vm41, %v158, %v160
    %162 = vrot.lane.b32.xlu0 %v159, 4
    %v163 = vpop.permute.xlu0 %162
    %164 = vrot.lane.b32.xlu0 %v161, 4
    %v165 = vpop.permute.xlu0 %164
    %v168 = vrot.slane %v153, 2
    %v169 = vrot.slane %v149, 2
    %v170 = vsel %vm53, %v168, %v169
    %v171 = vrot.slane %v154, 2
    %v172 = vsel %vm53, %v169, %v171
    %173 = vrot.lane.b32.xlu0 %v170, 8
    %v174 = vpop.permute.xlu0 %173
    %175 = vrot.lane.b32.xlu0 %v172, 8
    %v176 = vpop.permute.xlu0 %175
    %v179 = vrot.slane %v153, 3
    %v180 = vrot.slane %v149, 3
    %v181 = vsel %vm65, %v179, %v180
    %v182 = vrot.slane %v154, 3
    %v183 = vsel %vm65, %v180, %v182
    %184 = vrot.lane.b32.xlu0 %v181, 12
    %v185 = vpop.permute.xlu0 %184
    %186 = vrot.lane.b32.xlu0 %v183, 12
    %v187 = vpop.permute.xlu0 %186
    %v190 = vrot.slane %v153, 4
    %v191 = vrot.slane %v149, 4
    %v192 = vsel %vm77, %v190, %v191
    %v193 = vrot.slane %v154, 4
    %v194 = vsel %vm77, %v191, %v193
    %195 = vrot.lane.b32.xlu0 %v192, 16
    %v196 = vpop.permute.xlu0 %195
    %197 = vrot.lane.b32.xlu0 %v194, 16
    %v198 = vpop.permute.xlu0 %197
    %v201 = vrot.slane %v153, 5
    %v202 = vrot.slane %v149, 5
    %v203 = vsel %vm30, %v201, %v202
    %v204 = vrot.slane %v154, 5
    %v205 = vsel %vm30, %v202, %v204
    %206 = vrot.lane.b32.xlu0 %v203, 20
    %v207 = vpop.permute.xlu0 %206
    %208 = vrot.lane.b32.xlu0 %v205, 20
    %v209 = vpop.permute.xlu0 %208
    %v212 = vrot.slane %v153, 6
    %v213 = vrot.slane %v149, 6
    %v214 = vsel %vm100, %v212, %v213
    %v215 = vrot.slane %v154, 6
    %v216 = vsel %vm100, %v213, %v215
    %217 = vrot.lane.b32.xlu0 %v214, 24
    %v218 = vpop.permute.xlu0 %217
    %219 = vrot.lane.b32.xlu0 %v216, 24
    %v220 = vpop.permute.xlu0 %219
    %v223 = vrot.slane %v153, 7
    %v224 = vrot.slane %v149, 7
    %v225 = vsel %vm112, %v223, %v224
    %v226 = vrot.slane %v154, 7
    %v227 = vsel %vm112, %v224, %v226
    %228 = vrot.lane.b32.xlu0 %v225, 28
    %v229 = vpop.permute.xlu0 %228
    %230 = vrot.lane.b32.xlu0 %v227, 28
    %v231 = vpop.permute.xlu0 %230
    %v234 = vsel %vm124, %v153, %v163
    %v235 = vsel %vm124, %v149, %v165
    %v236 = vsel %vm127, %v234, %v174
    %v237 = vsel %vm127, %v235, %v176
    %v238 = vsel %vm130, %v236, %v185
    %v239 = vsel %vm130, %v237, %v187
    %v240 = vsel %vm133, %v238, %v196
    %v241 = vsel %vm133, %v239, %v198
    %v242 = vsel %vm136, %v240, %v207
    %v243 = vsel %vm136, %v241, %v209
    %v244 = vsel %vm139, %v242, %v218
    %v245 = vsel %vm139, %v243, %v220
    %v246 = vsel %vm142, %v244, %v229
    %v247 = vsel %vm142, %v245, %v231
    %v248 = vld [vmem:[%s1] sm:$0xff]
    %v249 = vld [vmem:[%s1 + $0x8] sm:$0xff]
    %v250 = vld [vmem:[%s1 + $0x10] sm:$0xff]
    %v251 = vld [vmem:[%s1 + $0x18] sm:$0xff]
    %vm252 = vcmask 261120
    %v254 = vsel %vm252, %v143, 0
    %v257 = vsel %vm252, %v144, 0
    %v260 = vsel %vm252, %v246, 0
    %v263 = vsel %vm252, %v247, 0
    %265 = vmatprep.subr.mxu0 0.0
    %266 = vmatpush1.msra.mxu0 %v248
    %267 = vmatprep.subr.mxu0 0.0
    %268 = vmatpush1.msra.mxu0 %v249
    %269 = vmatprep.subr.mxu0 0.0
    %270 = vmatpush1.msra.mxu0 %v250
    %271 = vmatprep.subr.mxu0 0.0
    %272 = vmatpush1.msra.mxu0 %v251
    %273 = vmatprep.subr.mxu0 0.0
    %274 = vmatpush1.msra.mxu0 0.0
    %275 = vmatprep.subr.mxu0 0.0
    %276 = vmatpush1.msra.mxu0 0.0
    %277 = vmatprep.subr.mxu0 0.0
    %278 = vmatpush1.msra.mxu0 0.0
    %279 = vmatprep.subr.mxu0 0.0
    %280 = vmatpush1.msra.mxu0 0.0
    %281 = vmatprep.subr.mxu0 0.0
    %282 = vmatpush1.msra.mxu0 0.0
    %283 = vmatprep.subr.mxu0 0.0
    %284 = vmatpush1.msra.mxu0 0.0
    %285 = vmatprep.subr.mxu0 0.0
    %286 = vmatpush1.msra.mxu0 0.0
    %287 = vmatprep.subr.mxu0 0.0
    %288 = vmatpush1.msra.mxu0 0.0
    %289 = vmatprep.subr.mxu0 0.0
    %290 = vmatpush1.msra.mxu0 0.0
    %291 = vmatprep.subr.mxu0 0.0
    %292 = vmatpush1.msra.mxu0 0.0
    %293 = vmatprep.subr.mxu0 0.0
    %294 = vmatpush1.msra.mxu0 0.0
    %295 = vmatprep.subr.mxu0 0.0
    %296 = vmatpush1.msra.mxu0 0.0
    %297 = vmatprep.subr.mxu0 0.0
    %298 = vmatpush1.msra.mxu0 0.0
    %299 = vmatprep.subr.mxu0 0.0
    %300 = vmatpush1.msra.mxu0 0.0
    %301 = vmatprep.subr.mxu0 0.0
    %302 = vmatpush1.msra.mxu0 0.0
    %303 = vmatprep.subr.mxu0 0.0
    %304 = vmatpush1.msra.mxu0 0.0
    %305 = vmatprep.subr.mxu0 0.0
    %306 = vmatpush1.msra.mxu0 0.0
    %307 = vmatprep.subr.mxu0 0.0
    %308 = vmatpush1.msra.mxu0 0.0
    %309 = vmatprep.subr.mxu0 0.0
    %310 = vmatpush1.msra.mxu0 0.0
    %311 = vmatprep.subr.mxu0 0.0
    %312 = vmatpush1.msra.mxu0 0.0
    %313 = vmatprep.subr.mxu0 0.0
    %314 = vmatpush1.msra.mxu0 0.0
    %315 = vmatprep.subr.mxu0 0.0
    %316 = vmatpush1.msra.mxu0 0.0
    %317 = vmatprep.subr.mxu0 0.0
    %318 = vmatpush1.msra.mxu0 0.0
    %319 = vmatprep.subr.mxu0 0.0
    %320 = vmatpush1.msra.mxu0 0.0
    %321 = vmatprep.subr.mxu0 0.0
    %322 = vmatpush1.msra.mxu0 0.0
    %323 = vmatprep.subr.mxu0 0.0
    %324 = vmatpush1.msra.mxu0 0.0
    %325 = vmatprep.subr.mxu0 0.0
    %326 = vmatpush1.msra.mxu0 0.0
    %327 = vmatprep.subr.mxu0 0.0
    %328 = vmatpush1.msra.mxu0 0.0
    %329 = vmatprep.mubr.f32.mxu0 0.0
    %330 = vmatmul.mubr.f32.gmra.mrb[0].mxu0 %v254
    %v331 = vpop.f32.mrb[0].mxu0
    %v332 = vadd.f32 0.0, %v331
    %v333 = vpop.f32.mrb[0].mxu0
    %334 = vmatprep.mubr.f32.mxu0 0.0
    %335 = vmatmul.mubr.f32.gmra.mrb[0].mxu0 %v257
    %v336 = vpop.f32.mrb[0].mxu0
    %v337 = vadd.f32 0.0, %v336
    %v338 = vpop.f32.mrb[0].mxu0
    %339 = vmatprep.mubr.f32.mxu0 0.0
    %340 = vmatmul.mubr.f32.gmra.mrb[0].mxu0 %v260
    %v341 = vpop.f32.mrb[0].mxu0
    %v342 = vadd.f32 0.0, %v341
    %v343 = vpop.f32.mrb[0].mxu0
    %344 = vmatprep.mubr.f32.mxu0 0.0
    %345 = vmatmul.mubr.f32.gmra.mrb[0].mxu0 %v263
    %v346 = vpop.f32.mrb[0].mxu0
    %v347 = vadd.f32 0.0, %v346
    %v348 = vpop.f32.mrb[0].mxu0
    %349 = vdwg.mxu0
    %v352 = vrot.slane %v332, 5
    %v353 = vrot.slane %v337, 5
    %v354 = vsel %vm30, %v352, %v353
    %v358 = vsel %vm30, 0.0, %v352
    %v359 = vsel %vm30, %v353, 0.0
    %v362 = vrot.slane %v358, 1
    %v363 = vrot.slane %v354, 1
    %v364 = vsel %vm41, %v362, %v363
    %v365 = vrot.slane %v359, 1
    %v366 = vsel %vm41, %v363, %v365
    %367 = vrot.lane.b32.xlu0 %v364, 4
    %v368 = vpop.permute.xlu0 %367
    %369 = vrot.lane.b32.xlu0 %v366, 4
    %v370 = vpop.permute.xlu0 %369
    %v373 = vrot.slane %v358, 2
    %v374 = vrot.slane %v354, 2
    %v375 = vsel %vm53, %v373, %v374
    %v376 = vrot.slane %v359, 2
    %v377 = vsel %vm53, %v374, %v376
    %378 = vrot.lane.b32.xlu0 %v375, 8
    %v379 = vpop.permute.xlu0 %378
    %380 = vrot.lane.b32.xlu0 %v377, 8
    %v381 = vpop.permute.xlu0 %380
    %v384 = vrot.slane %v358, 3
    %v385 = vrot.slane %v354, 3
    %v386 = vsel %vm65, %v384, %v385
    %v387 = vrot.slane %v359, 3
    %v388 = vsel %vm65, %v385, %v387
    %389 = vrot.lane.b32.xlu0 %v386, 12
    %v390 = vpop.permute.xlu0 %389
    %391 = vrot.lane.b32.xlu0 %v388, 12
    %v392 = vpop.permute.xlu0 %391
    %v395 = vrot.slane %v358, 4
    %v396 = vrot.slane %v354, 4
    %v397 = vsel %vm77, %v395, %v396
    %v398 = vrot.slane %v359, 4
    %v399 = vsel %vm77, %v396, %v398
    %400 = vrot.lane.b32.xlu0 %v397, 16
    %v401 = vpop.permute.xlu0 %400
    %402 = vrot.lane.b32.xlu0 %v399, 16
    %v403 = vpop.permute.xlu0 %402
    %v406 = vrot.slane %v358, 5
    %v407 = vrot.slane %v354, 5
    %v408 = vsel %vm30, %v406, %v407
    %v409 = vrot.slane %v359, 5
    %v410 = vsel %vm30, %v407, %v409
    %411 = vrot.lane.b32.xlu0 %v408, 20
    %v412 = vpop.permute.xlu0 %411
    %413 = vrot.lane.b32.xlu0 %v410, 20
    %v414 = vpop.permute.xlu0 %413
    %v417 = vrot.slane %v358, 6
    %v418 = vrot.slane %v354, 6
    %v419 = vsel %vm100, %v417, %v418
    %v420 = vrot.slane %v359, 6
    %v421 = vsel %vm100, %v418, %v420
    %422 = vrot.lane.b32.xlu0 %v419, 24
    %v423 = vpop.permute.xlu0 %422
    %424 = vrot.lane.b32.xlu0 %v421, 24
    %v425 = vpop.permute.xlu0 %424
    %v428 = vrot.slane %v358, 7
    %v429 = vrot.slane %v354, 7
    %v430 = vsel %vm112, %v428, %v429
    %v431 = vrot.slane %v359, 7
    %v432 = vsel %vm112, %v429, %v431
    %433 = vrot.lane.b32.xlu0 %v430, 28
    %v434 = vpop.permute.xlu0 %433
    %435 = vrot.lane.b32.xlu0 %v432, 28
    %v436 = vpop.permute.xlu0 %435
    %v439 = vsel %vm124, %v358, %v368
    %v440 = vsel %vm124, %v354, %v370
    %v441 = vsel %vm127, %v439, %v379
    %v442 = vsel %vm127, %v440, %v381
    %v443 = vsel %vm130, %v441, %v390
    %v444 = vsel %vm130, %v442, %v392
    %v445 = vsel %vm133, %v443, %v401
    %v446 = vsel %vm133, %v444, %v403
    %v447 = vsel %vm136, %v445, %v412
    %v448 = vsel %vm136, %v446, %v414
    %v449 = vsel %vm139, %v447, %v423
    %v450 = vsel %vm139, %v448, %v425
    %v451 = vsel %vm142, %v449, %v434
    %v452 = vsel %vm142, %v450, %v436
    %v455 = vrot.slane %v342, 5
    %v456 = vrot.slane %v347, 5
    %v457 = vsel %vm30, %v455, %v456
    %v461 = vsel %vm30, 0.0, %v455
    %v462 = vsel %vm30, %v456, 0.0
    %v465 = vrot.slane %v461, 1
    %v466 = vrot.slane %v457, 1
    %v467 = vsel %vm41, %v465, %v466
    %v468 = vrot.slane %v462, 1
    %v469 = vsel %vm41, %v466, %v468
    %470 = vrot.lane.b32.xlu0 %v467, 4
    %v471 = vpop.permute.xlu0 %470
    %472 = vrot.lane.b32.xlu0 %v469, 4
    %v473 = vpop.permute.xlu0 %472
    %v476 = vrot.slane %v461, 2
    %v477 = vrot.slane %v457, 2
    %v478 = vsel %vm53, %v476, %v477
    %v479 = vrot.slane %v462, 2
    %v480 = vsel %vm53, %v477, %v479
    %481 = vrot.lane.b32.xlu0 %v478, 8
    %v482 = vpop.permute.xlu0 %481
    %483 = vrot.lane.b32.xlu0 %v480, 8
    %v484 = vpop.permute.xlu0 %483
    %v487 = vrot.slane %v461, 3
    %v488 = vrot.slane %v457, 3
    %v489 = vsel %vm65, %v487, %v488
    %v490 = vrot.slane %v462, 3
    %v491 = vsel %vm65, %v488, %v490
    %492 = vrot.lane.b32.xlu0 %v489, 12
    %v493 = vpop.permute.xlu0 %492
    %494 = vrot.lane.b32.xlu0 %v491, 12
    %v495 = vpop.permute.xlu0 %494
    %v498 = vrot.slane %v461, 4
    %v499 = vrot.slane %v457, 4
    %v500 = vsel %vm77, %v498, %v499
    %v501 = vrot.slane %v462, 4
    %v502 = vsel %vm77, %v499, %v501
    %503 = vrot.lane.b32.xlu0 %v500, 16
    %v504 = vpop.permute.xlu0 %503
    %505 = vrot.lane.b32.xlu0 %v502, 16
    %v506 = vpop.permute.xlu0 %505
    %v509 = vrot.slane %v461, 5
    %v510 = vrot.slane %v457, 5
    %v511 = vsel %vm30, %v509, %v510
    %v512 = vrot.slane %v462, 5
    %v513 = vsel %vm30, %v510, %v512
    %514 = vrot.lane.b32.xlu0 %v511, 20
    %v515 = vpop.permute.xlu0 %514
    %516 = vrot.lane.b32.xlu0 %v513, 20
    %v517 = vpop.permute.xlu0 %516
    %v520 = vrot.slane %v461, 6
    %v521 = vrot.slane %v457, 6
    %v522 = vsel %vm100, %v520, %v521
    %v523 = vrot.slane %v462, 6
    %v524 = vsel %vm100, %v521, %v523
    %525 = vrot.lane.b32.xlu0 %v522, 24
    %v526 = vpop.permute.xlu0 %525
    %527 = vrot.lane.b32.xlu0 %v524, 24
    %v528 = vpop.permute.xlu0 %527
    %v531 = vrot.slane %v461, 7
    %v532 = vrot.slane %v457, 7
    %v533 = vsel %vm112, %v531, %v532
    %v534 = vrot.slane %v462, 7
    %v535 = vsel %vm112, %v532, %v534
    %536 = vrot.lane.b32.xlu0 %v533, 28
    %v537 = vpop.permute.xlu0 %536
    %538 = vrot.lane.b32.xlu0 %v535, 28
    %v539 = vpop.permute.xlu0 %538
    %v542 = vsel %vm124, %v461, %v471
    %v543 = vsel %vm124, %v457, %v473
    %v544 = vsel %vm127, %v542, %v482
    %v545 = vsel %vm127, %v543, %v484
    %v546 = vsel %vm130, %v544, %v493
    %v547 = vsel %vm130, %v545, %v495
    %v548 = vsel %vm133, %v546, %v504
    %v549 = vsel %vm133, %v547, %v506
    %v550 = vsel %vm136, %v548, %v515
    %v551 = vsel %vm136, %v549, %v517
    %v552 = vsel %vm139, %v550, %v526
    %v553 = vsel %vm139, %v551, %v528
    %v554 = vsel %vm142, %v552, %v537
    %v555 = vsel %vm142, %v553, %v539
    %v556 = vld [vmem:[%s2] sm:$0xff]
    %v557 = vld [vmem:[%s2 + $0x8] sm:$0xff]
    %v558 = vld [vmem:[%s2 + $0x10] sm:$0xff]
    %v559 = vld [vmem:[%s2 + $0x18] sm:$0xff]
    %v561 = vsel %vm252, %v451, 0
    %v564 = vsel %vm252, %v452, 0
    %v567 = vsel %vm252, %v554, 0
    %v570 = vsel %vm252, %v555, 0
    %572 = vmatprep.subr.mxu0 0.0
    %573 = vmatpush1.msra.mxu0 %v556
    %574 = vmatprep.subr.mxu0 0.0
    %575 = vmatpush1.msra.mxu0 %v557
    %576 = vmatprep.subr.mxu0 0.0
    %577 = vmatpush1.msra.mxu0 %v558
    %578 = vmatprep.subr.mxu0 0.0
    %579 = vmatpush1.msra.mxu0 %v559
    %580 = vmatprep.subr.mxu0 0.0
    %581 = vmatpush1.msra.mxu0 0.0
    %582 = vmatprep.subr.mxu0 0.0
    %583 = vmatpush1.msra.mxu0 0.0
    %584 = vmatprep.subr.mxu0 0.0
    %585 = vmatpush1.msra.mxu0 0.0
    %586 = vmatprep.subr.mxu0 0.0
    %587 = vmatpush1.msra.mxu0 0.0
    %588 = vmatprep.subr.mxu0 0.0
    %589 = vmatpush1.msra.mxu0 0.0
    %590 = vmatprep.subr.mxu0 0.0
    %591 = vmatpush1.msra.mxu0 0.0
    %592 = vmatprep.subr.mxu0 0.0
    %593 = vmatpush1.msra.mxu0 0.0
    %594 = vmatprep.subr.mxu0 0.0
    %595 = vmatpush1.msra.mxu0 0.0
    %596 = vmatprep.subr.mxu0 0.0
    %597 = vmatpush1.msra.mxu0 0.0
    %598 = vmatprep.subr.mxu0 0.0
    %599 = vmatpush1.msra.mxu0 0.0
    %600 = vmatprep.subr.mxu0 0.0
    %601 = vmatpush1.msra.mxu0 0.0
    %602 = vmatprep.subr.mxu0 0.0
    %603 = vmatpush1.msra.mxu0 0.0
    %604 = vmatprep.subr.mxu0 0.0
    %605 = vmatpush1.msra.mxu0 0.0
    %606 = vmatprep.subr.mxu0 0.0
    %607 = vmatpush1.msra.mxu0 0.0
    %608 = vmatprep.subr.mxu0 0.0
    %609 = vmatpush1.msra.mxu0 0.0
    %610 = vmatprep.subr.mxu0 0.0
    %611 = vmatpush1.msra.mxu0 0.0
    %612 = vmatprep.subr.mxu0 0.0
    %613 = vmatpush1.msra.mxu0 0.0
    %614 = vmatprep.subr.mxu0 0.0
    %615 = vmatpush1.msra.mxu0 0.0
    %616 = vmatprep.subr.mxu0 0.0
    %617 = vmatpush1.msra.mxu0 0.0
    %618 = vmatprep.subr.mxu0 0.0
    %619 = vmatpush1.msra.mxu0 0.0
    %620 = vmatprep.subr.mxu0 0.0
    %621 = vmatpush1.msra.mxu0 0.0
    %622 = vmatprep.subr.mxu0 0.0
    %623 = vmatpush1.msra.mxu0 0.0
    %624 = vmatprep.subr.mxu0 0.0
    %625 = vmatpush1.msra.mxu0 0.0
    %626 = vmatprep.subr.mxu0 0.0
    %627 = vmatpush1.msra.mxu0 0.0
    %628 = vmatprep.subr.mxu0 0.0
    %629 = vmatpush1.msra.mxu0 0.0
    %630 = vmatprep.subr.mxu0 0.0
    %631 = vmatpush1.msra.mxu0 0.0
    %632 = vmatprep.subr.mxu0 0.0
    %633 = vmatpush1.msra.mxu0 0.0
    %634 = vmatprep.subr.mxu0 0.0
    %635 = vmatpush1.msra.mxu0 0.0
    %636 = vmatprep.mubr.f32.mxu0 0.0
    %637 = vmatmul.mubr.f32.gmra.mrb[0].mxu0 %v561
    %v638 = vpop.f32.mrb[0].mxu0
    %v639 = vadd.f32 0.0, %v638
    %v640 = vpop.f32.mrb[0].mxu0
    %641 = vmatprep.mubr.f32.mxu0 0.0
    %642 = vmatmul.mubr.f32.gmra.mrb[0].mxu0 %v564
    %v643 = vpop.f32.mrb[0].mxu0
    %v644 = vadd.f32 0.0, %v643
    %v645 = vpop.f32.mrb[0].mxu0
    %646 = vmatprep.mubr.f32.mxu0 0.0
    %647 = vmatmul.mubr.f32.gmra.mrb[0].mxu0 %v567
    %v648 = vpop.f32.mrb[0].mxu0
    %v649 = vadd.f32 0.0, %v648
    %v650 = vpop.f32.mrb[0].mxu0
    %651 = vmatprep.mubr.f32.mxu0 0.0
    %652 = vmatmul.mubr.f32.gmra.mrb[0].mxu0 %v570
    %v653 = vpop.f32.mrb[0].mxu0
    %v654 = vadd.f32 0.0, %v653
    %v655 = vpop.f32.mrb[0].mxu0
    %656 = vdwg.mxu0
    %657 = vrot.lane.b32.xlu0 %v143, 124
    %v658 = vpop.permute.xlu0 %657
    %659 = vrot.lane.b32.xlu0 %v144, 124
    %v660 = vpop.permute.xlu0 %659
    %661 = vrot.lane.b32.xlu0 %v246, 124
    %v662 = vpop.permute.xlu0 %661
    %663 = vrot.lane.b32.xlu0 %v247, 124
    %v664 = vpop.permute.xlu0 %663
    %v669 = vmax.f32 %v143, %v658
    %v670 = vmax.f32 %v144, %v660
    %v671 = vmax.f32 %v246, %v662
    %v672 = vmax.f32 %v247, %v664
    %673 = vrot.lane.b32.xlu0 %v143, 120
    %v674 = vpop.permute.xlu0 %673
    %675 = vrot.lane.b32.xlu0 %v144, 120
    %v676 = vpop.permute.xlu0 %675
    %677 = vrot.lane.b32.xlu0 %v246, 120
    %v678 = vpop.permute.xlu0 %677
    %679 = vrot.lane.b32.xlu0 %v247, 120
    %v680 = vpop.permute.xlu0 %679
    %v685 = vmax.f32 %v669, %v674
    %v686 = vmax.f32 %v670, %v676
    %v687 = vmax.f32 %v671, %v678
    %v688 = vmax.f32 %v672, %v680
    %v689 = vld [vmem:[%s3] sm:$0xf]
    %694 = vrot.lane.b32.xlu0 %v685, 120
    %v695 = vpop.permute.xlu0 %694
    %696 = vrot.lane.b32.xlu0 %v686, 120
    %v697 = vpop.permute.xlu0 %696
    %698 = vrot.lane.b32.xlu0 %v687, 120
    %v699 = vpop.permute.xlu0 %698
    %700 = vrot.lane.b32.xlu0 %v688, 120
    %v701 = vpop.permute.xlu0 %700
    %v702 = vsel %vm124, %v695, 0
    %v704 = vsel %vm124, %v697, 0
    %v706 = vsel %vm124, %v699, 0
    %v708 = vsel %vm124, %v701, 0
    %v711 = vsel %vm77, %v689, 0
    %713 = vmatprep.subr.mxu0 0.0
    %714 = vmatpush1.msra.mxu0 %v711
    %715 = vmatprep.subr.mxu0 0.0
    %716 = vmatpush1.msra.mxu0 0.0
    %717 = vmatprep.subr.mxu0 0.0
    %718 = vmatpush1.msra.mxu0 0.0
    %719 = vmatprep.subr.mxu0 0.0
    %720 = vmatpush1.msra.mxu0 0.0
    %721 = vmatprep.subr.mxu0 0.0
    %722 = vmatpush1.msra.mxu0 0.0
    %723 = vmatprep.subr.mxu0 0.0
    %724 = vmatpush1.msra.mxu0 0.0
    %725 = vmatprep.subr.mxu0 0.0
    %726 = vmatpush1.msra.mxu0 0.0
    %727 = vmatprep.subr.mxu0 0.0
    %728 = vmatpush1.msra.mxu0 0.0
    %729 = vmatprep.subr.mxu0 0.0
    %730 = vmatpush1.msra.mxu0 0.0
    %731 = vmatprep.subr.mxu0 0.0
    %732 = vmatpush1.msra.mxu0 0.0
    %733 = vmatprep.subr.mxu0 0.0
    %734 = vmatpush1.msra.mxu0 0.0
    %735 = vmatprep.subr.mxu0 0.0
    %736 = vmatpush1.msra.mxu0 0.0
    %737 = vmatprep.subr.mxu0 0.0
    %738 = vmatpush1.msra.mxu0 0.0
    %739 = vmatprep.subr.mxu0 0.0
    %740 = vmatpush1.msra.mxu0 0.0
    %741 = vmatprep.subr.mxu0 0.0
    %742 = vmatpush1.msra.mxu0 0.0
    %743 = vmatprep.subr.mxu0 0.0
    %744 = vmatpush1.msra.mxu0 0.0
    %745 = vmatprep.subr.mxu0 0.0
    %746 = vmatpush1.msra.mxu0 0.0
    %747 = vmatprep.subr.mxu0 0.0
    %748 = vmatpush1.msra.mxu0 0.0
    %749 = vmatprep.subr.mxu0 0.0
    %750 = vmatpush1.msra.mxu0 0.0
    %751 = vmatprep.subr.mxu0 0.0
    %752 = vmatpush1.msra.mxu0 0.0
    %753 = vmatprep.subr.mxu0 0.0
    %754 = vmatpush1.msra.mxu0 0.0
    %755 = vmatprep.subr.mxu0 0.0
    %756 = vmatpush1.msra.mxu0 0.0
    %757 = vmatprep.subr.mxu0 0.0
    %758 = vmatpush1.msra.mxu0 0.0
    %759 = vmatprep.subr.mxu0 0.0
    %760 = vmatpush1.msra.mxu0 0.0
    %761 = vmatprep.subr.mxu0 0.0
    %762 = vmatpush1.msra.mxu0 0.0
    %763 = vmatprep.subr.mxu0 0.0
    %764 = vmatpush1.msra.mxu0 0.0
    %765 = vmatprep.subr.mxu0 0.0
    %766 = vmatpush1.msra.mxu0 0.0
    %767 = vmatprep.subr.mxu0 0.0
    %768 = vmatpush1.msra.mxu0 0.0
    %769 = vmatprep.subr.mxu0 0.0
    %770 = vmatpush1.msra.mxu0 0.0
    %771 = vmatprep.subr.mxu0 0.0
    %772 = vmatpush1.msra.mxu0 0.0
    %773 = vmatprep.subr.mxu0 0.0
    %774 = vmatpush1.msra.mxu0 0.0
    %775 = vmatprep.subr.mxu0 0.0
    %776 = vmatpush1.msra.mxu0 0.0
    %777 = vmatprep.mubr.f32.mxu0 0.0
    %778 = vmatmul.mubr.f32.gmra.mrb[0].mxu0 %v702
    %v779 = vpop.f32.mrb[0].mxu0
    %v780 = vadd.f32 0.0, %v779
    %v781 = vpop.f32.mrb[0].mxu0
    %782 = vmatprep.mubr.f32.mxu0 0.0
    %783 = vmatmul.mubr.f32.gmra.mrb[0].mxu0 %v704
    %v784 = vpop.f32.mrb[0].mxu0
    %v785 = vadd.f32 0.0, %v784
    %v786 = vpop.f32.mrb[0].mxu0
    %787 = vmatprep.mubr.f32.mxu0 0.0
    %788 = vmatmul.mubr.f32.gmra.mrb[0].mxu0 %v706
    %v789 = vpop.f32.mrb[0].mxu0
    %v790 = vadd.f32 0.0, %v789
    %v791 = vpop.f32.mrb[0].mxu0
    %792 = vmatprep.mubr.f32.mxu0 0.0
    %793 = vmatmul.mubr.f32.gmra.mrb[0].mxu0 %v708
    %v794 = vpop.f32.mrb[0].mxu0
    %v795 = vadd.f32 0.0, %v794
    %v796 = vpop.f32.mrb[0].mxu0
    %797 = vdwg.mxu0
    %802 = vrot.lane.b32.xlu0 %v639, 16
    %v803 = vpop.permute.xlu0 %802
    %804 = vrot.lane.b32.xlu0 %v644, 16
    %v805 = vpop.permute.xlu0 %804
    %806 = vrot.lane.b32.xlu0 %v649, 16
    %v807 = vpop.permute.xlu0 %806
    %808 = vrot.lane.b32.xlu0 %v654, 16
    %v809 = vpop.permute.xlu0 %808
    %818 = vrot.lane.b32.xlu0 %v780, 24
    %v819 = vpop.permute.xlu0 %818
    %820 = vrot.lane.b32.xlu0 %v785, 24
    %v821 = vpop.permute.xlu0 %820
    %822 = vrot.lane.b32.xlu0 %v790, 24
    %v823 = vpop.permute.xlu0 %822
    %824 = vrot.lane.b32.xlu0 %v795, 24
    %v825 = vpop.permute.xlu0 %824
    %v830 = vsel %vm133, %v639, %v803
    %v831 = vsel %vm133, %v644, %v805
    %v832 = vsel %vm133, %v649, %v807
    %v833 = vsel %vm133, %v654, %v809
    %v834 = vsel %vm139, %v830, %v819
    %v835 = vsel %vm139, %v831, %v821
    %v836 = vsel %vm139, %v832, %v823
    %v837 = vsel %vm139, %v833, %v825
    %v838 = vsel %vm252, %v834, 0.0
    %v839 = vsel %vm252, %v835, 0.0
    %v840 = vadd.f32 %v838, %v839
    %v841 = vsel %vm252, %v836, 0.0
    %v842 = vadd.f32 %v840, %v841
    %v843 = vsel %vm252, %v837, 0.0
    %v844 = vadd.f32 %v842, %v843
    %v845 = vrot.slane %v844, 4
    %v846 = vadd.f32 %v844, %v845
    %v847 = vrot.slane %v846, 2
    %v848 = vadd.f32 %v846, %v847
    %v849 = vrot.slane %v848, 1
    %v850 = vadd.f32 %v848, %v849
    %v851 = vrcp.pop 32.0
    %v852 = vmul.f32 %v850, %v851
    %v853 = vsub.f32 %v834, %v852
    %v854 = vsub.f32 %v835, %v852
    %v855 = vsub.f32 %v836, %v852
    %v856 = vsub.f32 %v837, %v852
    %v857 = vmul.f32 %v853, %v853
    %v858 = vmul.f32 %v854, %v854
    %v859 = vmul.f32 %v855, %v855
    %v860 = vmul.f32 %v856, %v856
    %v861 = vsel %vm252, %v857, 0.0
    %v862 = vsel %vm252, %v858, 0.0
    %v863 = vadd.f32 %v861, %v862
    %v864 = vsel %vm252, %v859, 0.0
    %v865 = vadd.f32 %v863, %v864
    %v866 = vsel %vm252, %v860, 0.0
    %v867 = vadd.f32 %v865, %v866
    %v868 = vrot.slane %v867, 4
    %v869 = vadd.f32 %v867, %v868
    %v870 = vrot.slane %v869, 2
    %v871 = vadd.f32 %v869, %v870
    %v872 = vrot.slane %v871, 1
    %v873 = vadd.f32 %v871, %v872
    %v874 = vmul.f32 %v873, %v851
    %v875 = vld [vmem:[%s4] sm:$0x1]
    %v876 = vadd.f32 %v874, 1e-05
    %v877 = vrsqrt.pop %v876
    %v878 = vmul.f32 %v875, %v877
    %v879 = vld [vmem:[%s5] sm:$0x1]
    %v880 = vmul.f32 %v852, %v878
    %v881 = vsub.f32 %v879, %v880
    %v883 = vlaneseq
    %v884 = vshrl.u32 %v883, 7
    %v885 = vsub.s32 0, %v884
    %v886 = vrot.slane %v878, %v885
    %v888 = vmul.f32 %v834, %v886
    %v889 = vmul.f32 %v835, %v886
    %v890 = vmul.f32 %v836, %v886
    %v891 = vmul.f32 %v837, %v886
    %v893 = vlaneseq
    %v894 = vshrl.u32 %v893, 7
    %v895 = vsub.s32 0, %v894
    %v896 = vrot.slane %v881, %v895
    %v898 = vadd.f32 %v888, %v896
    %v899 = vadd.f32 %v889, %v896
    %v900 = vadd.f32 %v890, %v896
    %v901 = vadd.f32 %v891, %v896
    %v902 = vmax.f32 %v898, 0.0
    %v903 = vmax.f32 %v899, 0.0
    %v904 = vmax.f32 %v900, 0.0
    %v905 = vmax.f32 %v901, 0.0
    %906 = vst.msk [vmem:[#allocation2] sm:$0xff] %vm252, %v902
    %907 = vst.msk [vmem:[#allocation2 + $0x8] sm:$0xff] %vm252, %v903
    %908 = vst.msk [vmem:[#allocation2 + $0x10] sm:$0xff] %vm252, %v904
    %909 = vst.msk [vmem:[#allocation2 + $0x18] sm:$0xff] %vm252, %v905
    // Predicated region
    $region26: #{inception_forward.1} parent=1 // pred_check
      _
    $region27: #{inception_forward.1} parent=1 // pred_check_branch
      %911 = sbr.rel (0) target = $region29
    $region28: #{inception_forward.1} parent=1 // pred_region
      %s913 = ssub.s32 512, 512
      %914 = vsyncadd [#allocation3], %s913
      %s915 = sshll.u32 [#allocation2], 4
      %s916 = int_to_ptr.vmem [resolvable:$true] %s915
      %921 = dma.vmem_to_hbm [thread:$0]  %s916, 512, %s6, [#allocation3], 128, 128, 8
    $region29: #{inception_forward.1} parent=1 // pred_fallthru
      _
    // Predicated region
    $region30: #{inception_forward.1} parent=1 // pred_check
      _
    $region31: #{inception_forward.1} parent=1 // pred_check_branch
      %923 = sbr.rel (0) target = $region33
    $region32: #{inception_forward.1} parent=1 // pred_region
      %924 = dma.done [#allocation3], 512
    $region33: #{inception_forward.1} parent=1 // pred_fallthru
      _
    %925 = vsyncpa [#allocation3], 1

</llo_original>
